<compile_context>
chip_gen: v7x
topology: tpu7x:2x2x1
jax: 0.10.0
libtpu: 0.0.40
codegen_flags: <defaults>
</compile_context>

<pallas_src>
import functools
import math

import jax
import jax.numpy as jnp
import numpy as np
from jax.experimental import pallas as pl
from jax.experimental.pallas import tpu as pltpu


def _round_up(x, m):
    return ((x + m - 1) // m) * m


# ---------------------------------------------------------------------------
# PE table (module buffer) -- exact replica of the PyTorch __init__ loops,
# including the intentional 2*i (sin) vs 2*(i+1) (cos) exponent asymmetry.
# ---------------------------------------------------------------------------
def build_pe_table(d_model, max_seq_len=160):
    assert d_model % 2 == 0, "reference module requires even d_model"
    pos = np.arange(max_seq_len, dtype=np.float64)[:, None]       # (S, 1)
    i = np.arange(0, d_model, 2, dtype=np.float64)[None, :]       # (1, D/2)
    pe = np.zeros((max_seq_len, d_model), dtype=np.float32)
    pe[:, 0::2] = np.sin(pos / np.power(10000.0, 2.0 * i / d_model))
    pe[:, 1::2] = np.cos(pos / np.power(10000.0, 2.0 * (i + 1) / d_model))
    return jnp.asarray(pe)


# ---------------------------------------------------------------------------
# Kernel: out = x * sqrt(d_model) + pe   (pe replicated across the batch axis)
#   x_ref/o_ref blocks: (ts, B*D)   (lane-dense)
#   pe_ref block:       (ts, D)     if replicate > 1 (in-kernel concat)
#                       (ts, B*D)   if replicate == 1 (already replicated)
# ---------------------------------------------------------------------------
def _posenc_kernel(x_ref, pe_ref, o_ref, *, scale, replicate):
    pe = pe_ref[...]                                   # f32
    if replicate > 1:
        # lane-tile-aligned concat (only taken when d_model % 128 == 0)
        pe = jnp.concatenate([pe] * replicate, axis=-1)
    x = x_ref[...].astype(jnp.float32)
    o_ref[...] = (x * scale + pe).astype(o_ref.dtype)


def _pick_seq_tile(seq_len, width, pe_block_width, itemsize,
                   budget_bytes=10 << 20):
    """Seq-tile (multiple of the sublane tile) whose double-buffered
    x/out/pe blocks fit a budget computed against the *padded* VMEM layout."""
    sub = max(8, 32 // itemsize)              # sublane multiple for x/out dtype
    xrow = _round_up(width, 128) * itemsize            # x and out rows (padded)
    perow = _round_up(pe_block_width, 128) * 4          # pe is f32
    per_row = 2 * (2 * xrow + perow)                    # double-buffered
    ts = max(sub, (budget_bytes // per_row) // sub * sub)
    sp = _round_up(seq_len, sub)
    if sp >= 2 * sub:                  # force >= 2 grid steps (v7x: 2 TCs/chip)
        ts = min(ts, max(sub, (sp // 2) // sub * sub))
    return min(ts, sp)


def positional_encoder_forward(x, pe):
    """x: (seq_len, batch, d_model); pe: (max_seq_len, d_model) buffer."""
    S, B, D = x.shape
    max_S, pe_D = pe.shape
    assert pe_D == D, "pe buffer width must match d_model"
    assert S <= max_S, "seq_len exceeds the module's max_seq_len"
    scale = float(math.sqrt(D))
    W = B * D
    itemsize = x.dtype.itemsize

    x2 = x.reshape(S, W)                         # free (contiguous) reshape
    pe32 = pe.astype(jnp.float32)

    # How pe gets replicated across batch.
    if B == 1:
        pe_in, pe_bw, replicate = pe32, D, 1
    elif D % 128 == 0:
        # lane-aligned in-kernel replication: pe traffic stays at S*D
        pe_in, pe_bw, replicate = pe32, D, B
    else:
        # odd widths (e.g. d_model=32): pre-tile the tiny pe buffer once
        pe_in, pe_bw, replicate = None, W, 1     # pe_in filled below (needs ts)

    ts = _pick_seq_tile(S, W, pe_bw, itemsize)
    grid = (pl.cdiv(S, ts),)

    if pe_in is None:
        rows = min(max_S, grid[0] * ts)
        pe_in = jnp.tile(pe32[:rows], (1, B))    # (rows, B*D), lane-dense

    # Double-buffered VMEM estimate (padded layout); raise the scoped limit
    # only if the minimal tile needs it (budget above already fits v5e's
    # 16 MiB default, v6e/v7x 32 MiB defaults).
    est = 2 * ts * (2 * _round_up(W, 128) * itemsize + _round_up(pe_bw, 128) * 4)
    vmem_limit = None if est <= (12 << 20) else min(
        _round_up(est * 5 // 4, 1 << 20), 32 << 20)

    out2 = pl.pallas_call(
        functools.partial(_posenc_kernel, scale=scale, replicate=replicate),
        out_shape=jax.ShapeDtypeStruct((S, W), x.dtype),
        grid_spec=pltpu.PrefetchScalarGridSpec(
            num_scalar_prefetch=0,
            grid=grid,
            in_specs=[
                pl.BlockSpec((ts, W), lambda i: (i, 0)),      # x tile
                pl.BlockSpec((ts, pe_bw), lambda i: (i, 0)),  # pe tile
            ],
            out_specs=pl.BlockSpec((ts, W), lambda i: (i, 0)),
        ),
        compiler_params=pltpu.CompilerParams(
            dimension_semantics=("parallel",),
            vmem_limit_bytes=vmem_limit),
    )(x2, pe_in)
    return out2.reshape(S, B, D)


def _reference(x, pe):
    S, B, D = x.shape
    ref = x.astype(jnp.float32) * math.sqrt(D) + pe[:S][:, None, :]
    return ref.astype(x.dtype)


if __name__ == "__main__":
    root = jax.random.PRNGKey(0)
    k1, k2, k3, k4 = jax.random.split(root, 4)
    fwd = jax.jit(positional_encoder_forward)

    # module-style buffers
    pe32d = build_pe_table(32, 160)
    pe128d = build_pe_table(128, 160)

    def check(x, pe, tol):
        out = jax.block_until_ready(fwd(x, pe))
        ref = _reference(x, pe)
        assert out.shape == x.shape and out.dtype == x.dtype
        assert bool(jnp.allclose(out.astype(jnp.float32),
                                 ref.astype(jnp.float32), atol=tol, rtol=tol))

    # 1) canonical small shape (seq=8, batch=2, d_model=32) -> pre-tiled pe path
    check(jax.random.normal(k1, (8, 2, 32), jnp.float32), pe32d, 1e-5)

    # 2) ragged seq_len (exercises masked edge block, grid of 3)
    check(jax.random.normal(k2, (20, 3, 32), jnp.float32), pe32d, 1e-5)

    # 3) d_model multiple of 128 -> in-kernel lane-aligned pe replication
    check(jax.random.normal(k3, (16, 4, 128), jnp.float32), pe128d, 1e-5)

    # 4) bfloat16 activations (f32 compute in-kernel, bf16 store)
    check(jax.random.normal(k4, (32, 4, 128), jnp.float32).astype(jnp.bfloat16),
          pe128d, 2e-2)

    print("KERNEL_OK")
</pallas_src>

<mosaic_0001>
module attributes {stable_mosaic.version = 11 : i64} {
  func.func @_posenc_kernel(%arg0: i32, %arg1: memref<8x64xf32, #tpu.memory_space<vmem>>, %arg2: memref<8x64xf32, #tpu.memory_space<vmem>>, %arg3: memref<8x64xf32, #tpu.memory_space<vmem>>) attributes {dimension_semantics = [#tpu.dimension_semantics<parallel>], iteration_bounds = array<i64: 1>, scalar_prefetch = 0 : i64, scratch_operands = 0 : i64, tpu.core_type = #tpu.core_type<tc>, window_params = [{transform_indices = @transform_0, window_bounds = array<i64: 8, 64>}, {transform_indices = @transform_1, window_bounds = array<i64: 8, 64>}, {transform_indices = @transform_2, window_bounds = array<i64: 8, 64>}]} {
    %c0 = arith.constant 0 : index
    %c0_0 = arith.constant 0 : index
    %0 = vector.load %arg2[%c0, %c0_0] : memref<8x64xf32, #tpu.memory_space<vmem>>, vector<8x64xf32>
    %c0_1 = arith.constant 0 : index
    %c0_2 = arith.constant 0 : index
    %1 = vector.load %arg1[%c0_1, %c0_2] : memref<8x64xf32, #tpu.memory_space<vmem>>, vector<8x64xf32>
    %cst = arith.constant 5.65685415 : f32
    %2 = vector.broadcast %cst : f32 to vector<8x64xf32>
    %3 = arith.mulf %1, %2 : vector<8x64xf32>
    %4 = arith.addf %3, %0 : vector<8x64xf32>
    %c0_3 = arith.constant 0 : index
    %c0_4 = arith.constant 0 : index
    %5 = vector.load %arg3[%c0_3, %c0_4] : memref<8x64xf32, #tpu.memory_space<vmem>>, vector<8x64xf32>
    tpu.vector_store %arg3[%c0_3, %c0_4], %4 {strides = array<i32>} : memref<8x64xf32, #tpu.memory_space<vmem>>, vector<8x64xf32>,
    return
  }
  func.func @transform_0(%arg0: i32) -> (i32, i32) {
    %c0_i32 = arith.constant 0 : i32
    %c0_i32_0 = arith.constant 0 : i32
    return %arg0, %c0_i32 : i32, i32
  }
  func.func @transform_1(%arg0: i32) -> (i32, i32) {
    %c0_i32 = arith.constant 0 : i32
    %c0_i32_0 = arith.constant 0 : i32
    return %arg0, %c0_i32 : i32, i32
  }
  func.func @transform_2(%arg0: i32) -> (i32, i32) {
    %c0_i32 = arith.constant 0 : i32
    %c0_i32_0 = arith.constant 0 : i32
    return %arg0, %c0_i32 : i32, i32
  }
}

</mosaic_0001>

<llo_original>
// kernel: tile.9
$region0: #{tile.9}
  %s0 = inlined_call_operand.vmem [shape: f32[8,2,32], index: 0, kind: input, shape index: {}]
  %s1 = inlined_call_operand.vmem [shape: f32[8,64], index: 1, kind: output, shape index: {}]
  $region1: #{tile.9} parent=0
    #allocation0 [shape = 'u8[32768]{0}', space=vmem, size = 0x8000, scoped, tag = 'scoped mem for input reshape']
    %s3 = sshllo.u32 0, 2
    %s4 = smul.addr 2, 7
    %s5 = scalar_lea.vmem %s0, %s4
    %v6 = vld [vmem:[%s5] sm:%s3]
    %s7 = scalar_lea.vmem [#allocation0], 56
    %8 = vst [vmem:[%s7] sm:%s3] %v6
    %s9 = smul.addr 2, 6
    %s10 = scalar_lea.vmem %s0, %s9
    %v11 = vld [vmem:[%s10] sm:%s3]
    %s12 = scalar_lea.vmem [#allocation0], 48
    %13 = vst [vmem:[%s12] sm:%s3] %v11
    %s14 = smul.addr 2, 5
    %s15 = scalar_lea.vmem %s0, %s14
    %v16 = vld [vmem:[%s15] sm:%s3]
    %s17 = scalar_lea.vmem [#allocation0], 40
    %18 = vst [vmem:[%s17] sm:%s3] %v16
    %s19 = smul.addr 2, 4
    %s20 = scalar_lea.vmem %s0, %s19
    %v21 = vld [vmem:[%s20] sm:%s3]
    %s22 = scalar_lea.vmem [#allocation0], 32
    %23 = vst [vmem:[%s22] sm:%s3] %v21
    %s24 = smul.addr 2, 3
    %s25 = scalar_lea.vmem %s0, %s24
    %v26 = vld [vmem:[%s25] sm:%s3]
    %s27 = scalar_lea.vmem [#allocation0], 24
    %28 = vst [vmem:[%s27] sm:%s3] %v26
    %s29 = smul.addr 2, 2
    %s30 = scalar_lea.vmem %s0, %s29
    %v31 = vld [vmem:[%s30] sm:%s3]
    %s32 = scalar_lea.vmem [#allocation0], 16
    %33 = vst [vmem:[%s32] sm:%s3] %v31
    %s34 = scalar_lea.vmem %s0, 2
    %v35 = vld [vmem:[%s34] sm:%s3]
    %s36 = scalar_lea.vmem [#allocation0], 8
    %37 = vst [vmem:[%s36] sm:%s3] %v35
    %v38 = vld [vmem:[%s0] sm:%s3]
    %39 = vst [vmem:[#allocation0] sm:%s3] %v38
    %v40 = vld [vmem:[#allocation0] ss:$8 sm:$0xf]
    %v41 = vld [vmem:[#allocation0] ss:$8 sm:$0xf0]
    %vm42 = vcmask 1047556
    %v43 = vsel %vm42, %v41, %v40
    %vm44 = vcmask 261120
    %45 = vst.msk [vmem:[%s1] sm:$0xff] %vm44, %v43
    %s46 = scalar_lea.vmem [#allocation0], 1
    %v47 = vld [vmem:[%s46] ss:$8 sm:$0xf]
    %s48 = scalar_lea.vmem [#allocation0], 1
    %v49 = vld [vmem:[%s48] ss:$8 sm:$0xf0]
    %vm50 = vcmask 1047556
    %v51 = vsel %vm50, %v49, %v47
    %52 = vrot.lane.b32.xlu0 %v51, 32
    %v53 = vpop.permute.xlu0 %52
    %vm54 = vcmask 523520
    %55 = vst.msk [vmem:[%s1] sm:$0xff] %vm54, %v53

// kernel: positional_encoder_forward.1
$region0: #{positional_encoder_forward.1}
  #allocation0 [shape = 'u32[]', space=smem, size = 0x4, offset = 0x4, fixed_abs, tag = 'smem constant byte address 0x4 - core index']
  #allocation1 [shape = 'u32[144,128]{1,0:T(1,128)}', space=vmem, size = 0x12000, scoped, tag = 'internal scratch']
  %s0 = inlined_call_operand.vmem [shape: f32[8,64], index: 0, kind: input, shape index: {}]
  %s1 = inlined_call_operand.vmem [shape: f32[8,64], index: 1, kind: input, shape index: {}]
  %s2 = inlined_call_operand.vmem [shape: f32[8,64], index: 2, kind: output, shape index: {}]
  %s3 = sld [smem:[#allocation0]]
  $region18: #{positional_encoder_forward.1} parent=0
    _
  %s5 = ssub.s32 1, %s3
  %s6 = scalar_select 0, %s5, %s3
  // Predicated region
  $region2: #{positional_encoder_forward.1} parent=0 // pred_check
    _
  $region3: #{positional_encoder_forward.1} parent=0 // pred_check_branch
    %8 = sbr.rel (0) target = $region5
  $region4: #{positional_encoder_forward.1} parent=0 // pred_region
    _
  $region5: #{positional_encoder_forward.1} parent=0 // pred_fallthru
    _
  // Predicated region
  $region6: #{positional_encoder_forward.1} parent=0 // pred_check
    _
  $region7: #{positional_encoder_forward.1} parent=0 // pred_check_branch
    %10 = sbr.rel (0) target = $region9
  $region8: #{positional_encoder_forward.1} parent=0 // pred_region
    _
  $region9: #{positional_encoder_forward.1} parent=0 // pred_fallthru
    _
  %v11 = vld [vmem:[%s1] sm:$0xff]
  %v12 = vld [vmem:[%s0] sm:$0xff]
  %v13 = vmul.f32 %v12, 5.656854
  %v14 = vadd.f32 %v13, %v11
  %vm15 = vcmask 523264
  %16 = vst.msk [vmem:[%s2] sm:$0xff] %vm15, %v14
  // Predicated region
  $region10: #{positional_encoder_forward.1} parent=0 // pred_check
    _
  $region11: #{positional_encoder_forward.1} parent=0 // pred_check_branch
    %18 = sbr.rel (0) target = $region13
  $region12: #{positional_encoder_forward.1} parent=0 // pred_region
    _
  $region13: #{positional_encoder_forward.1} parent=0 // pred_fallthru
    _
  // Predicated region
  $region14: #{positional_encoder_forward.1} parent=0 // pred_check
    _
  $region15: #{positional_encoder_forward.1} parent=0 // pred_check_branch
    %20 = sbr.rel (0) target = $region17
  $region16: #{positional_encoder_forward.1} parent=0 // pred_region
    _
  $region17: #{positional_encoder_forward.1} parent=0 // pred_fallthru
    _

</llo_original>
